<compile_context>
chip_gen: v6e
topology: v6e:2x2x1
jax: 0.10.0
libtpu: 0.0.40
codegen_flags: <defaults>
</compile_context>

<pallas_src>
import jax
import jax.numpy as jnp
from jax.experimental import pallas as pl
from jax.experimental.pallas import tpu as pltpu

_LANE = 128
_SUBLANE = 8


def _make_bce_kernel(rows, tile_rows, lane, k_steps, needs_mask):
    """Builds the BCE partial-sum kernel for one row-split of the flat image."""

    def kernel(recon_ref, x_ref, partial_ref, acc_ref):
        k = pl.program_id(1)

        rx = recon_ref[...].astype(jnp.float32)
        xt = x_ref[...].astype(jnp.float32)
        # PyTorch clamps the log terms at -100 to avoid -inf.
        log_rx = jnp.maximum(jnp.log(rx), -100.0)
        log_1m = jnp.maximum(jnp.log(1.0 - rx), -100.0)
        # bce = -(x*log(rx) + (1-x)*log(1-rx)) rewritten to save VALU ops.
        bce = -(xt * (log_rx - log_1m) + log_1m)

        if needs_mask:
            # Zero padded / out-of-range rows of the last (overhanging) tile.
            start = (pl.program_id(0) * k_steps + k) * tile_rows
            row_ids = jax.lax.broadcasted_iota(jnp.int32, (tile_rows, lane), 0)
            bce = jnp.where(row_ids < (rows - start), bce, 0.0)

        # Fold the tile into a single vreg: plain VALU adds, no XLU.
        partial = bce.reshape(tile_rows // _SUBLANE, _SUBLANE, lane).sum(axis=0)

        @pl.when(k == 0)
        def _():
            acc_ref[...] = partial          # direct store, no zero-init pass

        @pl.when(k > 0)
        def _():
            acc_ref[...] = acc_ref[...] + partial

        @pl.when(k == k_steps - 1)
        def _():
            # Single cross-lane reduce over 1024 elems, once per split.
            partial_ref[...] = jnp.sum(acc_ref[...]).reshape(1, 1, 1)

    return kernel


def _default_num_splits():
    """2 row-splits (one per TensorCore) on v7x, 1 on single-TC chips."""
    try:
        kind = jax.devices()[0].device_kind.lower()
    except Exception:
        return 1
    return 2 if ("v7" in kind or "7x" in kind) else 1


def vae_loss(recon_x, x, mu, logvar, *, num_splits=None,
             vmem_tile_budget_bytes=16 * 1024 * 1024,
             vmem_limit_bytes=32 * 1024 * 1024,
             min_pipeline_steps=4,
             max_tile_rows_cap=8192):
    """Pallas implementation of VAELoss(recon_loss='BCE').forward."""
    assert recon_x.shape == x.shape
    n = int(recon_x.size)
    lane = _LANE

    recon_flat = jnp.reshape(recon_x, (-1,))
    x_flat = jnp.reshape(x, (-1,))

    rows = n // lane
    tail = n - rows * lane

    if num_splits is None:
        num_splits = _default_num_splits()

    bce_sum = jnp.float32(0.0)

    if rows > 0:
        # Lane-dense slabs in native dtype (no forced f32 copy in HBM).
        recon2d = jnp.reshape(recon_flat[: rows * lane], (rows, lane))
        x2d = jnp.reshape(x_flat[: rows * lane], (rows, lane))

        # --- tile geometry ---------------------------------------------------
        itemsize = max(jnp.dtype(recon2d.dtype).itemsize,
                       jnp.dtype(x2d.dtype).itemsize)
        # 2 inputs x double buffer (native dtype); accumulator is one vreg.
        bytes_per_row = lane * itemsize * 4
        max_tile_rows = (vmem_tile_budget_bytes // bytes_per_row) // _SUBLANE * _SUBLANE
        max_tile_rows = max(_SUBLANE, min(max_tile_rows, max_tile_rows_cap))

        # Target >= min_pipeline_steps grid steps per split so the DMA stays
        # overlapped with the log/BCE compute.
        rows_per_split = -(-rows // num_splits)
        target_rows = -(-rows_per_split // min_pipeline_steps)
        target_rows = -(-target_rows // _SUBLANE) * _SUBLANE
        tile_rows = max(_SUBLANE, min(max_tile_rows, target_rows))

        total_blocks = -(-rows // tile_rows)
        if total_blocks < num_splits:
            num_splits = 1
        k_steps = -(-total_blocks // num_splits)
        # Mask needed if the last tile overhangs the array or some grid steps
        # map to (clamped) duplicate blocks.
        needs_mask = (num_splits * k_steps * tile_rows != rows)

        def in_map(i, k):
            # Clamp so over-provisioned steps re-read a valid block; the
            # in-kernel row mask zeroes their contribution.
            return (jnp.minimum(i * k_steps + k, total_blocks - 1), 0)

        kernel = _make_bce_kernel(rows, tile_rows, lane, k_steps, needs_mask)

        if num_splits > 1:
            # Shard the row split across the two TensorCores on v7x.
            dim_sems = (getattr(pltpu, "CORE_PARALLEL", "parallel"), "arbitrary")
        else:
            dim_sems = ("arbitrary", "arbitrary")

        partials = pl.pallas_call(
            kernel,
            out_shape=jax.ShapeDtypeStruct((num_splits, 1, 1), jnp.float32),
            grid_spec=pltpu.PrefetchScalarGridSpec(
                num_scalar_prefetch=0,
                grid=(num_splits, k_steps),
                in_specs=[
                    pl.BlockSpec((tile_rows, lane), in_map),   # recon_x tile
                    pl.BlockSpec((tile_rows, lane), in_map),   # x tile
                ],
                out_specs=pl.BlockSpec((1, 1, 1), lambda i, k: (i, 0, 0)),
                scratch_shapes=[pltpu.VMEM((_SUBLANE, lane), jnp.float32)],
            ),
            compiler_params=pltpu.CompilerParams(
                dimension_semantics=dim_sems,
                vmem_limit_bytes=vmem_limit_bytes,
            ),
        )(recon2d, x2d)
        bce_sum = jnp.sum(partials)

    if tail > 0:
        # Sub-128-element remainder: one vreg of work, plain jnp in the wrapper.
        r_t = recon_flat[rows * lane:].astype(jnp.float32)
        x_t = x_flat[rows * lane:].astype(jnp.float32)
        log_r = jnp.maximum(jnp.log(r_t), -100.0)
        log_1m = jnp.maximum(jnp.log(1.0 - r_t), -100.0)
        bce_sum = bce_sum + jnp.sum(-(x_t * (log_r - log_1m) + log_1m))

    recon_loss = bce_sum / float(n)

    # KL term on the tiny (B, latent) tensors: plain jnp in the wrapper.
    mu32 = mu.astype(jnp.float32)
    lv32 = logvar.astype(jnp.float32)
    kld = -0.5 * jnp.mean(1.0 + lv32 - mu32 * mu32 - jnp.exp(lv32))
    return recon_loss + kld


def _reference_vae_loss(recon_x, x, mu, logvar):
    rx = recon_x.astype(jnp.float32)
    xt = x.astype(jnp.float32)
    log_rx = jnp.maximum(jnp.log(rx), -100.0)
    log_1m_rx = jnp.maximum(jnp.log(1.0 - rx), -100.0)
    recon_loss = jnp.mean(-(xt * log_rx + (1.0 - xt) * log_1m_rx))
    kld = -0.5 * jnp.mean(1.0 + logvar - mu * mu - jnp.exp(logvar))
    return recon_loss + kld


if __name__ == "__main__":
    key = jax.random.PRNGKey(0)
    k1, k2, k3, k4 = jax.random.split(key, 4)

    B, C, H, W = 2, 4, 16, 16
    LATENT = 32

    # recon_x must be in (0, 1) for BCE; x in [0, 1].
    recon_x = jax.nn.sigmoid(jax.random.normal(k1, (B, C, H, W), jnp.float32))
    x = jax.random.uniform(k2, (B, C, H, W), jnp.float32)
    mu = jax.random.normal(k3, (B, LATENT), jnp.float32) * 0.5
    logvar = jax.random.normal(k4, (B, LATENT), jnp.float32) * 0.1

    loss = jax.block_until_ready(vae_loss(recon_x, x, mu, logvar))
    ref = jax.block_until_ready(_reference_vae_loss(recon_x, x, mu, logvar))

    assert jnp.allclose(loss, ref, rtol=1e-5, atol=1e-5), (loss, ref)
    print("KERNEL_OK")
</pallas_src>

<mosaic_0001>
module attributes {stable_mosaic.version = 11 : i64} {
  func.func @kernel(%arg0: i32, %arg1: i32, %arg2: memref<8x128xf32, #tpu.memory_space<vmem>>, %arg3: memref<8x128xf32, #tpu.memory_space<vmem>>, %arg4: memref<1x1x1xf32, #tpu.memory_space<vmem>>, %arg5: memref<8x128xf32, #tpu.memory_space<vmem>>) attributes {dimension_semantics = [#tpu.dimension_semantics<arbitrary>, #tpu.dimension_semantics<arbitrary>], iteration_bounds = array<i64: 1, 2>, scalar_prefetch = 0 : i64, scratch_operands = 1 : i64, tpu.core_type = #tpu.core_type<tc>, window_params = [{transform_indices = @transform_0, window_bounds = array<i64: 8, 128>}, {transform_indices = @transform_1, window_bounds = array<i64: 8, 128>}, {transform_indices = @transform_2, window_bounds = array<i64: 1, 1, 1>}]} {
    %c0 = arith.constant 0 : index
    %c0_0 = arith.constant 0 : index
    %0 = vector.load %arg2[%c0, %c0_0] : memref<8x128xf32, #tpu.memory_space<vmem>>, vector<8x128xf32>
    %c0_1 = arith.constant 0 : index
    %c0_2 = arith.constant 0 : index
    %1 = vector.load %arg3[%c0_1, %c0_2] : memref<8x128xf32, #tpu.memory_space<vmem>>, vector<8x128xf32>
    %2 = math.log %0 : vector<8x128xf32>
    %cst = arith.constant -1.000000e+02 : f32
    %3 = vector.broadcast %cst : f32 to vector<8x128xf32>
    %4 = arith.maximumf %2, %3 : vector<8x128xf32>
    %cst_3 = arith.constant 1.000000e+00 : f32
    %5 = vector.broadcast %cst_3 : f32 to vector<8x128xf32>
    %6 = arith.subf %5, %0 : vector<8x128xf32>
    %7 = math.log %6 : vector<8x128xf32>
    %cst_4 = arith.constant -1.000000e+02 : f32
    %8 = vector.broadcast %cst_4 : f32 to vector<8x128xf32>
    %9 = arith.maximumf %7, %8 : vector<8x128xf32>
    %10 = arith.subf %4, %9 : vector<8x128xf32>
    %11 = arith.mulf %1, %10 : vector<8x128xf32>
    %12 = arith.addf %11, %9 : vector<8x128xf32>
    %cst_5 = arith.constant 0.000000e+00 : f32
    %13 = vector.broadcast %cst_5 : f32 to vector<8x128xf32>
    %14 = arith.subf %13, %12 : vector<8x128xf32>
    %15 = vector.shape_cast %14 : vector<8x128xf32> to vector<1x8x128xf32>
    %cst_6 = arith.constant dense<0.000000e+00> : vector<8x128xf32>
    %16 = vector.multi_reduction <add>, %15, %cst_6 [0] : vector<1x8x128xf32> to vector<8x128xf32>
    %c0_i32 = arith.constant 0 : i32
    %17 = arith.cmpi eq, %arg1, %c0_i32 : i32
    %18 = arith.extui %17 : i1 to i32
    %c0_i32_7 = arith.constant 0 : i32
    %19 = arith.cmpi ne, %18, %c0_i32_7 : i32
    scf.if %19 {
      %c0_11 = arith.constant 0 : index
      %c0_12 = arith.constant 0 : index
      %26 = vector.load %arg5[%c0_11, %c0_12] : memref<8x128xf32, #tpu.memory_space<vmem>>, vector<8x128xf32>
      tpu.vector_store %arg5[%c0_11, %c0_12], %16 {strides = array<i32>} : memref<8x128xf32, #tpu.memory_space<vmem>>, vector<8x128xf32>,
    } else {
    }
    %c0_i32_8 = arith.constant 0 : i32
    %20 = arith.cmpi sgt, %arg1, %c0_i32_8 : i32
    %21 = arith.extui %20 : i1 to i32
    %c0_i32_9 = arith.constant 0 : i32
    %22 = arith.cmpi ne, %21, %c0_i32_9 : i32
    scf.if %22 {
      %c0_11 = arith.constant 0 : index
      %c0_12 = arith.constant 0 : index
      %26 = vector.load %arg5[%c0_11, %c0_12] : memref<8x128xf32, #tpu.memory_space<vmem>>, vector<8x128xf32>
      %27 = arith.addf %26, %16 : vector<8x128xf32>
      %c0_13 = arith.constant 0 : index
      %c0_14 = arith.constant 0 : index
      %28 = vector.load %arg5[%c0_13, %c0_14] : memref<8x128xf32, #tpu.memory_space<vmem>>, vector<8x128xf32>
      tpu.vector_store %arg5[%c0_13, %c0_14], %27 {strides = array<i32>} : memref<8x128xf32, #tpu.memory_space<vmem>>, vector<8x128xf32>,
    } else {
    }
    %c1_i32 = arith.constant 1 : i32
    %23 = arith.cmpi eq, %arg1, %c1_i32 : i32
    %24 = arith.extui %23 : i1 to i32
    %c0_i32_10 = arith.constant 0 : i32
    %25 = arith.cmpi ne, %24, %c0_i32_10 : i32
    scf.if %25 {
      %c0_11 = arith.constant 0 : index
      %c0_12 = arith.constant 0 : index
      %26 = vector.load %arg5[%c0_11, %c0_12] : memref<8x128xf32, #tpu.memory_space<vmem>>, vector<8x128xf32>
      %27 = vector.shape_cast %26 : vector<8x128xf32> to vector<1x8x128xf32>
      %cst_13 = arith.constant dense<0.000000e+00> : vector<1xf32>
      %28 = vector.multi_reduction <add>, %27, %cst_13 [1, 2] : vector<1x8x128xf32> to vector<1xf32>
      %29 = vector.shape_cast %28 : vector<1xf32> to vector<1x1x1xf32>
      %30 = vector.extract %29[0, 0, 0] : f32 from vector<1x1x1xf32>
      %31 = vector.broadcast %30 : f32 to vector<1x1x1xf32>
      %c0_14 = arith.constant 0 : index
      %c0_15 = arith.constant 0 : index
      %c0_16 = arith.constant 0 : index
      %32 = vector.load %arg4[%c0_14, %c0_15, %c0_16] : memref<1x1x1xf32, #tpu.memory_space<vmem>>, vector<1x1x1xf32>
      tpu.vector_store %arg4[%c0_14, %c0_15, %c0_16], %31 {strides = array<i32>} : memref<1x1x1xf32, #tpu.memory_space<vmem>>, vector<1x1x1xf32>,
    } else {
    }
    return
  }
  func.func @transform_0(%arg0: i32, %arg1: i32) -> (i32, i32) {
    %c2_i32 = arith.constant 2 : i32
    %0 = arith.muli %arg0, %c2_i32 : i32
    %1 = arith.addi %0, %arg1 : i32
    %c1_i32 = arith.constant 1 : i32
    %2 = arith.minsi %1, %c1_i32 : i32
    %c0_i32 = arith.constant 0 : i32
    %c0_i32_0 = arith.constant 0 : i32
    return %2, %c0_i32 : i32, i32
  }
  func.func @transform_1(%arg0: i32, %arg1: i32) -> (i32, i32) {
    %c2_i32 = arith.constant 2 : i32
    %0 = arith.muli %arg0, %c2_i32 : i32
    %1 = arith.addi %0, %arg1 : i32
    %c1_i32 = arith.constant 1 : i32
    %2 = arith.minsi %1, %c1_i32 : i32
    %c0_i32 = arith.constant 0 : i32
    %c0_i32_0 = arith.constant 0 : i32
    return %2, %c0_i32 : i32, i32
  }
  func.func @transform_2(%arg0: i32, %arg1: i32) -> (i32, i32, i32) {
    %c0_i32 = arith.constant 0 : i32
    %c0_i32_0 = arith.constant 0 : i32
    %c0_i32_1 = arith.constant 0 : i32
    return %arg0, %c0_i32, %c0_i32_0 : i32, i32, i32
  }
}

</mosaic_0001>

<llo_original>
// kernel: tpu_custom_call.1
$region0: #{tpu_custom_call.1}
  #allocation0 [shape = 'u32[]', space=smem, size = 0x4, offset = 0x4, fixed_abs, tag = 'smem constant byte address 0x4 - core index']
  #allocation1 [shape = 'u32[144,128]{1,0:T(1,128)}', space=vmem, size = 0x12000, scoped, tag = 'internal scratch']
  #allocation2 [shape = 'f32[8,128]{1,0:T(8,128)}', space=vmem, size = 0x1000, scoped, tag = 'scratch operand']
  %s0 = inlined_call_operand.hbm [shape: f32[16,128], index: 0, kind: input, shape index: {}]
  %s1 = inlined_call_operand.hbm [shape: f32[16,128], index: 1, kind: input, shape index: {}]
  %s2 = inlined_call_operand.hbm [shape: f32[1,1,1], index: 2, kind: output, shape index: {}]
  %s3 = sld [smem:[#allocation0]]
  $region61: #{tpu_custom_call.1} parent=0
    _
  %s5 = ssub.s32 1, %s3
  %s6 = scalar_select 0, %s5, %s3
  $region1: #{tpu_custom_call.1} parent=0
    #allocation3 [shape = 'u8[8192]{0}', space=vmem, size = 0x2000, scoped, tag = 'input window, operand 0']
    #allocation4 [shape = 's32[2]{0}', space=sflag, size = 0x8, scoped, tag = 'scoped memory for tpu_custom_call.1']
    #allocation5 [shape = 's32[2]{0}', space=sflag, size = 0x8, scoped, tag = 'scoped memory for tpu_custom_call.1']
    #allocation6 [shape = 'u8[8192]{0}', space=vmem, size = 0x2000, scoped, tag = 'input window, operand 1']
    #allocation7 [shape = 's32[2]{0}', space=sflag, size = 0x8, scoped, tag = 'scoped memory for tpu_custom_call.1']
    #allocation8 [shape = 'u8[512]{0}', space=vmem, size = 0x400, scoped, tag = 'output window, operand 0, single buffered']
    %7 = vsyncpa [#allocation4], 0
    %s8 = scalar_lea.sflag [#allocation4], 1
    %9 = vsyncpa %s8, 0
    %10 = vsyncpa [#allocation7], 0
    %s11 = scalar_lea.sflag [#allocation7], 1
    %12 = vsyncpa %s11, 0
    %13 = vsyncpa [#allocation5], 0
    loop: start=0, step=1, limit=4
    $region2: #{tpu_custom_call.1} parent=1 // loop_pre_header
      _
    $region3: #{tpu_custom_call.1} parent=1 // loop_header
      %s15 = sphi 0, %s19
      %p16 = scmp.ge.s32.totalorder %s15, 4
      %s22 = sphi 0, %s34
      %s23 = sphi 0, %s30
      %s24 = sphi 0, %s22
      %s25 = sphi 0, %s23
      %s26 = sphi 0, %s24
      %s27 = sphi 0, %s25
      %s45 = sphi 0, %s47
      %s48 = sphi 0, %s45
      %s49 = sphi 0, %s48
      %s65 = sphi 0, %s49
      %s79 = sphi 0, %s81
      %s82 = sphi 0, %s79
      %s83 = sphi 0, %s82
      %s99 = sphi 0, %s83
      %s105 = sphi 0, %s107
      %s108 = sphi 0, %s105
      %s109 = sphi 0, %s108
      %s125 = sphi 0, %s109
    $region4: #{tpu_custom_call.1} parent=1 // loop_header_branch
      %18 = sbr.rel (%p16) target = $region8
    $region5: #{tpu_custom_call.1} parent=1 // loop_body
      %s20 = ssub.s32 %s15, 1
      %s21 = ssub.s32 %s15, 2
      %s28 = sadd.s32 1, %s23
      %p29 = scmp.ge.s32.totalorder %s28, 2
      %s30 = scalar_select %p29, 0, %s28
      %s31 = sadd.s32 1, %s22
      %s32 = scalar_select %p29, %s31, %s22
      %p33 = scmp.ge.s32.totalorder %s32, 1
      %s34 = scalar_select %p33, 0, %s32
      %s35 = smul.u32 %s22, 2
      %s36 = sadd.s32 %s35, %s23
      %p37 = scmp.lt.s32.totalorder %s36, 1
      %s38 = scalar_select %p37, %s36, 1
      %s39 = smul.u32 %s34, 2
      %s40 = sadd.s32 %s39, %s30
      %p41 = scmp.lt.s32.totalorder %s40, 1
      %s42 = scalar_select %p41, %s40, 1
      %s43 = ssub.s32 %s38, %s42
      %p44 = scmp.eq.s32.totalorder %s43, 0
      %s46 = sadd.s32 %s45, 1
      %s47 = scalar_select %p44, %s45, %s46
      %p50 = pneg %p44
      %p51 = scmp.eq.s32.totalorder %s15, 1
      %p52 = por %p50, %p51
      %p53 = scmp.ne.s32.totalorder %s45, %s48
      %p54 = scmp.eq.s32.totalorder %s15, 0
      %p55 = por %p53, %p54
      %p56 = scmp.ne.s32.totalorder %s45, %s48
      %p57 = scmp.eq.s32.totalorder %s20, 1
      %p58 = por %p56, %p57
      %p59 = scmp.ne.s32.totalorder %s48, %s49
      %p60 = scmp.eq.s32.totalorder %s20, 0
      %p61 = por %p59, %p60
      %p62 = scmp.ne.s32.totalorder %s48, %s49
      %p63 = scmp.eq.s32.totalorder %s21, 1
      %p64 = por %p62, %p63
      %p66 = scmp.ne.s32.totalorder %s49, %s65
      %p67 = scmp.eq.s32.totalorder %s21, 0
      %p68 = por %p66, %p67
      %s69 = smul.u32 %s22, 2
      %s70 = sadd.s32 %s69, %s23
      %p71 = scmp.lt.s32.totalorder %s70, 1
      %s72 = scalar_select %p71, %s70, 1
      %s73 = smul.u32 %s34, 2
      %s74 = sadd.s32 %s73, %s30
      %p75 = scmp.lt.s32.totalorder %s74, 1
      %s76 = scalar_select %p75, %s74, 1
      %s77 = ssub.s32 %s72, %s76
      %p78 = scmp.eq.s32.totalorder %s77, 0
      %s80 = sadd.s32 %s79, 1
      %s81 = scalar_select %p78, %s79, %s80
      %p84 = pneg %p78
      %p85 = scmp.eq.s32.totalorder %s15, 1
      %p86 = por %p84, %p85
      %p87 = scmp.ne.s32.totalorder %s79, %s82
      %p88 = scmp.eq.s32.totalorder %s15, 0
      %p89 = por %p87, %p88
      %p90 = scmp.ne.s32.totalorder %s79, %s82
      %p91 = scmp.eq.s32.totalorder %s20, 1
      %p92 = por %p90, %p91
      %p93 = scmp.ne.s32.totalorder %s82, %s83
      %p94 = scmp.eq.s32.totalorder %s20, 0
      %p95 = por %p93, %p94
      %p96 = scmp.ne.s32.totalorder %s82, %s83
      %p97 = scmp.eq.s32.totalorder %s21, 1
      %p98 = por %p96, %p97
      %p100 = scmp.ne.s32.totalorder %s83, %s99
      %p101 = scmp.eq.s32.totalorder %s21, 0
      %p102 = por %p100, %p101
      %s103 = ssub.s32 %s22, %s34
      %p104 = scmp.eq.s32.totalorder %s103, 0
      %s106 = sadd.s32 %s105, 1
      %s107 = scalar_select %p104, %s105, %s106
      %p110 = pneg %p104
      %p111 = scmp.eq.s32.totalorder %s15, 1
      %p112 = por %p110, %p111
      %p113 = scmp.ne.s32.totalorder %s105, %s108
      %p114 = scmp.eq.s32.totalorder %s15, 0
      %p115 = por %p113, %p114
      %p116 = scmp.ne.s32.totalorder %s105, %s108
      %p117 = scmp.eq.s32.totalorder %s20, 1
      %p118 = por %p116, %p117
      %p119 = scmp.ne.s32.totalorder %s108, %s109
      %p120 = scmp.eq.s32.totalorder %s20, 0
      %p121 = por %p119, %p120
      %p122 = scmp.ne.s32.totalorder %s108, %s109
      %p123 = scmp.eq.s32.totalorder %s21, 1
      %p124 = por %p122, %p123
      %p126 = scmp.ne.s32.totalorder %s109, %s125
      %p127 = scmp.eq.s32.totalorder %s21, 0
      %p128 = por %p126, %p127
      %p129 = scmp.le.s32.totalorder 1, %s15
      %p130 = scmp.lt.s32.totalorder %s15, 3
      %p131 = pnand %p129, %p130
      %p132 = pneg %p131
      // Predicated region
      $region9: #{tpu_custom_call.1} parent=5 // pred_check
        _
      $region10: #{tpu_custom_call.1} parent=5 // pred_check_branch
        %134 = sbr.rel (%p131) target = $region12
      $region11: #{tpu_custom_call.1} parent=5 // pred_region
        %s135 = ssub.s32 %s15, 1
      $region12: #{tpu_custom_call.1} parent=5 // pred_fallthru
        _
      %p136 = scmp.lt.s32.totalorder %s15, 2
      // Predicated region
      $region13: #{tpu_custom_call.1} parent=5 // pred_check
        %p137 = pneg %p136
      $region14: #{tpu_custom_call.1} parent=5 // pred_check_branch
        %139 = sbr.rel (%p137) target = $region16
      $region15: #{tpu_custom_call.1} parent=5 // pred_region
        // Predicated region
        $region17: #{tpu_custom_call.1} parent=15 // pred_check
          %p140 = pneg %p55
        $region18: #{tpu_custom_call.1} parent=15 // pred_check_branch
          %142 = sbr.rel (%p140) target = $region20
        $region19: #{tpu_custom_call.1} parent=15 // pred_region
          %s143 = sand.u32 %s45, 1
          %s144 = scalar_lea.sflag [#allocation4], %s143
          %s145 = sand.u32 %s45, 1
          %s146 = smul.addr %s145, 8
          %s147 = scalar_lea.vmem [#allocation3], %s146
          %s148 = smul.u32 %s22, 2
          %s149 = sadd.s32 %s148, %s23
          %p150 = scmp.lt.s32.totalorder %s149, 1
          %s151 = scalar_select %p150, %s149, 1
          %s153 = ssub.s32 128, 128
          %154 = vsyncadd %s144, %s153
          %s155 = smul.addr %s151, 128
          %s156 = scalar_lea.hbm %s0, %s155
          %s158 = sshll.u32 %s147, 4
          %s159 = int_to_ptr.vmem [resolvable:$true] %s158
          %161 = dma.hbm_to_vmem [thread:$0]  %s156, 128, %s159, %s144
        $region20: #{tpu_custom_call.1} parent=15 // pred_fallthru
          _
        // Predicated region
        $region21: #{tpu_custom_call.1} parent=15 // pred_check
          %p162 = pneg %p89
        $region22: #{tpu_custom_call.1} parent=15 // pred_check_branch
          %164 = sbr.rel (%p162) target = $region24
        $region23: #{tpu_custom_call.1} parent=15 // pred_region
          %s165 = sand.u32 %s79, 1
          %s166 = scalar_lea.sflag [#allocation7], %s165
          %s167 = sand.u32 %s79, 1
          %s168 = smul.addr %s167, 8
          %s169 = scalar_lea.vmem [#allocation6], %s168
          %s170 = smul.u32 %s22, 2
          %s171 = sadd.s32 %s170, %s23
          %p172 = scmp.lt.s32.totalorder %s171, 1
          %s173 = scalar_select %p172, %s171, 1
          %s175 = ssub.s32 128, 128
          %176 = vsyncadd %s166, %s175
          %s177 = smul.addr %s173, 128
          %s178 = scalar_lea.hbm %s1, %s177
          %s180 = sshll.u32 %s169, 4
          %s181 = int_to_ptr.vmem [resolvable:$true] %s180
          %183 = dma.hbm_to_vmem [thread:$0]  %s178, 128, %s181, %s166
        $region24: #{tpu_custom_call.1} parent=15 // pred_fallthru
          _
      $region16: #{tpu_custom_call.1} parent=5 // pred_fallthru
        _
      %p184 = scmp.le.s32.totalorder 1, %s15
      %p185 = scmp.lt.s32.totalorder %s15, 3
      %p186 = pnand %p184, %p185
      %p187 = pneg %p186
      // Predicated region
      $region25: #{tpu_custom_call.1} parent=5 // pred_check
        _
      $region26: #{tpu_custom_call.1} parent=5 // pred_check_branch
        %189 = sbr.rel (%p186) target = $region28
      $region27: #{tpu_custom_call.1} parent=5 // pred_region
        %s190 = ssub.s32 %s15, 1
        %s191 = sand.u32 %s48, 1
        %s192 = scalar_lea.sflag [#allocation4], %s191
        %s193 = sand.u32 %s48, 1
        %s194 = smul.addr %s193, 8
        %s195 = scalar_lea.vmem [#allocation3], %s194
        // Predicated region
        $region29: #{tpu_custom_call.1} parent=27 // pred_check
          %p196 = pneg %p61
        $region30: #{tpu_custom_call.1} parent=27 // pred_check_branch
          %198 = sbr.rel (%p196) target = $region32
        $region31: #{tpu_custom_call.1} parent=27 // pred_region
          %199 = dma.done %s192, 128
        $region32: #{tpu_custom_call.1} parent=27 // pred_fallthru
          _
        %s200 = sand.u32 %s82, 1
        %s201 = scalar_lea.sflag [#allocation7], %s200
        %s202 = sand.u32 %s82, 1
        %s203 = smul.addr %s202, 8
        %s204 = scalar_lea.vmem [#allocation6], %s203
        // Predicated region
        $region33: #{tpu_custom_call.1} parent=27 // pred_check
          %p205 = pneg %p95
        $region34: #{tpu_custom_call.1} parent=27 // pred_check_branch
          %207 = sbr.rel (%p205) target = $region36
        $region35: #{tpu_custom_call.1} parent=27 // pred_region
          %208 = dma.done %s201, 128
        $region36: #{tpu_custom_call.1} parent=27 // pred_fallthru
          _
        %s209 = sand.u32 %s48, 1
        %s210 = scalar_lea.sflag [#allocation4], %s209
        %s211 = sand.u32 %s48, 1
        %s212 = smul.addr %s211, 8
        %s213 = scalar_lea.vmem [#allocation3], %s212
        %p214 = pneg %p61
        %p215 = pneg %p58
        %s216 = sand.u32 %s82, 1
        %s217 = scalar_lea.sflag [#allocation7], %s216
        %s218 = sand.u32 %s82, 1
        %s219 = smul.addr %s218, 8
        %s220 = scalar_lea.vmem [#allocation6], %s219
        %p221 = pneg %p95
        %p222 = pneg %p92
        %p223 = pneg %p121
        %p224 = pneg %p118
        %s225 = smul.u32 %s24, 2
        %s226 = sadd.s32 %s225, %s25
        %p227 = scmp.lt.s32.totalorder %s226, 1
        %s228 = scalar_select %p227, %s226, 1
        %s229 = smul.u32 %s24, 2
        %s230 = sadd.s32 %s229, %s25
        %p231 = scmp.lt.s32.totalorder %s230, 1
        %s232 = scalar_select %p231, %s230, 1
        %v233 = vld [vmem:[%s195] sm:$0xff]
        %v234 = vld [vmem:[%s204] sm:$0xff]
        %v235 = vlog2.pop %v233
        %v236 = vmul.f32 %v235, 0.6931472
        %v237 = vmax.f32 %v236, -100.0
        %v238 = vsub.f32 1.0, %v233
        %v239 = vlog2.pop %v238
        %v240 = vmul.f32 %v239, 0.6931472
        %v241 = vmax.f32 %v240, -100.0
        %v242 = vsub.f32 %v237, %v241
        %v243 = vmul.f32 %v234, %v242
        %v244 = vadd.f32 %v243, %v241
        %v245 = vsub.f32 0.0, %v244
        %v246 = vadd.f32 %v245, 0.0
        %p247 = scmp.eq.s32.totalorder %s25, 0
        // Predicated region
        $region37: #{tpu_custom_call.1} parent=27 // pred_check
          %p248 = pneg %p247
        $region38: #{tpu_custom_call.1} parent=27 // pred_check_branch
          %250 = sbr.rel (%p248) target = $region40
        $region39: #{tpu_custom_call.1} parent=27 // pred_region
          %251 = vst [vmem:[#allocation2] sm:$0xff] %v246
        $region40: #{tpu_custom_call.1} parent=27 // pred_fallthru
          _
        %p252 = scmp.gt.s32.totalorder %s25, 0
        // Predicated region
        $region41: #{tpu_custom_call.1} parent=27 // pred_check
          %p253 = pneg %p252
        $region42: #{tpu_custom_call.1} parent=27 // pred_check_branch
          %255 = sbr.rel (%p253) target = $region44
        $region43: #{tpu_custom_call.1} parent=27 // pred_region
          %v256 = vld [vmem:[#allocation2] sm:$0xff]
          %v257 = vadd.f32 %v256, %v246
          %258 = vst [vmem:[#allocation2] sm:$0xff] %v257
        $region44: #{tpu_custom_call.1} parent=27 // pred_fallthru
          _
        %p259 = scmp.eq.s32.totalorder %s25, 1
        // Predicated region
        $region45: #{tpu_custom_call.1} parent=27 // pred_check
          %p260 = pneg %p259
        $region46: #{tpu_custom_call.1} parent=27 // pred_check_branch
          %262 = sbr.rel (%p260) target = $region48
        $region47: #{tpu_custom_call.1} parent=27 // pred_region
          %v263 = vld [vmem:[#allocation2] sm:$0xff]
          %264 = vadd.xlane.f32.xlu0 %v263
          %v265 = vpop.xlane.xlu0 %264
          %v266 = vrot.slane %v265, 4
          %v267 = vadd.f32 %v265, %v266
          %v268 = vrot.slane %v267, 2
          %v269 = vadd.f32 %v267, %v268
          %v270 = vrot.slane %v269, 1
          %v271 = vadd.f32 %v269, %v270
          %s272 = vtos %v271
          %v273 = vstv %s272
          %vm274 = vcmask 0
          %275 = vst.msk [vmem:[#allocation8] sm:$0x1] %vm274, %v273
        $region48: #{tpu_custom_call.1} parent=27 // pred_fallthru
          _
        // Predicated region
        $region49: #{tpu_custom_call.1} parent=27 // pred_check
          %p276 = pneg %p118
        $region50: #{tpu_custom_call.1} parent=27 // pred_check_branch
          %278 = sbr.rel (%p276) target = $region52
        $region51: #{tpu_custom_call.1} parent=27 // pred_region
          %s280 = ssub.s32 16, 16
          %281 = vsyncadd [#allocation5], %s280
          %s282 = smul.addr %s24, 16
          %s283 = scalar_lea.hbm %s2, %s282
          %s285 = sshll.u32 [#allocation8], 4
          %s286 = int_to_ptr.vmem [resolvable:$true] %s285
          %288 = dma.vmem_to_hbm [thread:$0]  %s286, 16, %s283, [#allocation5]
        $region52: #{tpu_custom_call.1} parent=27 // pred_fallthru
          _
        // Predicated region
        $region53: #{tpu_custom_call.1} parent=27 // pred_check
          %p289 = pneg %p118
        $region54: #{tpu_custom_call.1} parent=27 // pred_check_branch
          %291 = sbr.rel (%p289) target = $region56
        $region55: #{tpu_custom_call.1} parent=27 // pred_region
          %292 = dma.done [#allocation5], 16
        $region56: #{tpu_custom_call.1} parent=27 // pred_fallthru
          _
      $region28: #{tpu_custom_call.1} parent=5 // pred_fallthru
        _
      %p293 = scmp.le.s32.totalorder 2, %s15
      // Predicated region
      $region57: #{tpu_custom_call.1} parent=5 // pred_check
        %p294 = pneg %p293
      $region58: #{tpu_custom_call.1} parent=5 // pred_check_branch
        %296 = sbr.rel (%p294) target = $region60
      $region59: #{tpu_custom_call.1} parent=5 // pred_region
        %s297 = ssub.s32 %s15, 2
      $region60: #{tpu_custom_call.1} parent=5 // pred_fallthru
        _
    $region6: #{tpu_custom_call.1} parent=1 // loop_footer
      %s19 = sadd.s32 1, %s15
    $region7: #{tpu_custom_call.1} parent=1 // loop_footer_branch
      %14 = sbr.rel target = $region3
    $region8: #{tpu_custom_call.1} parent=1 // loop_exit
      _
    %298 = vsyncpa [#allocation4], 1
    %s299 = scalar_lea.sflag [#allocation4], 1
    %300 = vsyncpa %s299, 1
    %301 = vsyncpa [#allocation7], 1
    %s302 = scalar_lea.sflag [#allocation7], 1
    %303 = vsyncpa %s302, 1
    %304 = vsyncpa [#allocation5], 1
    %s305 = scalar_lea.sflag [#allocation5], 1
    %306 = vsyncpa %s305, 1

</llo_original>
